<compile_context>
chip_gen: v6e
topology: v6e:2x2x1
jax: 0.10.0
libtpu: 0.0.40
codegen_flags: <defaults>
</compile_context>

<pallas_src>
import math
import functools

import jax
import jax.numpy as jnp
from jax.experimental import pallas as pl
from jax.experimental.pallas import tpu as pltpu


# ------------------------------- Pallas kernel -------------------------------

def _ignore_linear_kernel(x_ref, w_ref, b_ref, g_ref, beta_ref, o_ref, acc_ref,
                          *, n_real, eps):
    """Fused Linear + BatchNorm1d over one (batch, TN) output slab.

    Grid axes: j = output-feature block ("parallel"), k = input-feature block
    (K-reduction, "arbitrary", innermost).
    """
    k = pl.program_id(1)

    @pl.when(k == 0)
    def _init():
        # Bias folded into the accumulator init: added exactly once per output
        # tile, never re-broadcast per K step.
        acc_ref[...] = jnp.broadcast_to(b_ref[...], acc_ref.shape).astype(jnp.float32)

    acc_ref[...] += jnp.dot(x_ref[...], w_ref[...],
                            preferred_element_type=jnp.float32)

    @pl.when(k == pl.num_programs(1) - 1)
    def _finalize():
        z = acc_ref[...]                                     # (B_pad, TN), f32
        if n_real == z.shape[0]:
            # No batch padding: plain per-feature batch statistics.
            mean = jnp.mean(z, axis=0, keepdims=True)
            zc = z - mean
            var = jnp.mean(zc * zc, axis=0, keepdims=True)
        else:
            # Exclude zero-padded rows from the statistics (static mask).
            row = jax.lax.broadcasted_iota(jnp.int32, z.shape, 0)
            mask = (row < n_real).astype(jnp.float32)
            inv_n = 1.0 / float(n_real)
            mean = jnp.sum(z * mask, axis=0, keepdims=True) * inv_n
            zc = (z - mean) * mask
            var = jnp.sum(zc * zc, axis=0, keepdims=True) * inv_n
        y = zc * jax.lax.rsqrt(var + eps) * g_ref[...] + beta_ref[...]
        o_ref[...] = y.astype(o_ref.dtype)


# --------------------------------- Wrapper -----------------------------------

def _round_up(x, m):
    return -(-x // m) * m


def _pick_tile(dim_padded, prefs=(512, 256, 128)):
    for t in prefs:
        if dim_padded % t == 0:
            return t
    return dim_padded  # unreachable: dim_padded is a multiple of 128


def ignore_linear(t, x, w, b, gamma, beta, *, eps=1e-5, tile_n=None, tile_k=None):
    """Forward of IgnoreLinear: BatchNorm1d(Linear(x)); `t` is ignored."""
    del t  # IgnoreLinear ignores the time input.

    batch, d_in = x.shape
    d_in_w, d_out = w.shape
    assert d_in_w == d_in, (w.shape, x.shape)

    # Pad to (8, 128)-aligned, lane-dense shapes.
    bp = max(_round_up(batch, 8), 8)
    dkp = _round_up(d_in, 128)
    dnp = _round_up(d_out, 128)
    tn = tile_n or _pick_tile(dnp)
    tk = tile_k or _pick_tile(dkp)
    assert dnp % tn == 0 and dkp % tk == 0

    xp = jnp.pad(x, ((0, bp - batch), (0, dkp - d_in)))
    wp = jnp.pad(w, ((0, dkp - d_in), (0, dnp - d_out)))
    b2 = jnp.pad(b.reshape(1, -1), ((0, 0), (0, dnp - d_out)))
    g2 = jnp.pad(gamma.reshape(1, -1), ((0, 0), (0, dnp - d_out)))
    be2 = jnp.pad(beta.reshape(1, -1), ((0, 0), (0, dnp - d_out)))

    grid = (dnp // tn, dkp // tk)

    # VMEM budget: double-buffered inputs + (double-buffered) output + f32
    # accumulator + headroom; clamp to v7x-safe limits.
    vmem_bytes = 4 * (2 * (bp * tk + tk * tn + 3 * tn) + 3 * bp * tn) + (1 << 20)
    vmem_bytes = int(min(max(vmem_bytes, 4 << 20), 64 << 20))

    kernel = functools.partial(_ignore_linear_kernel, n_real=batch, eps=eps)

    out = pl.pallas_call(
        kernel,
        out_shape=jax.ShapeDtypeStruct((bp, dnp), x.dtype),
        grid_spec=pltpu.PrefetchScalarGridSpec(
            num_scalar_prefetch=0,
            grid=grid,
            in_specs=[
                pl.BlockSpec((bp, tk), lambda j, k: (0, k)),  # x
                pl.BlockSpec((tk, tn), lambda j, k: (k, j)),  # W
                pl.BlockSpec((1, tn), lambda j, k: (0, j)),   # bias
                pl.BlockSpec((1, tn), lambda j, k: (0, j)),   # gamma
                pl.BlockSpec((1, tn), lambda j, k: (0, j)),   # beta
            ],
            out_specs=pl.BlockSpec((bp, tn), lambda j, k: (0, j)),
            scratch_shapes=[pltpu.VMEM((bp, tn), jnp.float32)],
        ),
        compiler_params=pltpu.CompilerParams(
            dimension_semantics=("parallel", "arbitrary"),
            vmem_limit_bytes=vmem_bytes,
        ),
    )(xp, wp, b2, g2, be2)

    return out[:batch, :d_out]


# ------------------------------ Pure-JAX reference ---------------------------

def ignore_linear_ref(t, x, w, b, gamma, beta, eps=1e-5):
    del t
    z = x @ w + b
    mean = jnp.mean(z, axis=0, keepdims=True)
    var = jnp.mean((z - mean) ** 2, axis=0, keepdims=True)  # biased, like PyTorch BN
    return gamma * (z - mean) / jnp.sqrt(var + eps) + beta


# ----------------------------------- Main ------------------------------------

if __name__ == "__main__":
    key = jax.random.PRNGKey(0)

    def make_params(k, d_in, d_out):
        kw, kb, kg, kbt = jax.random.split(k, 4)
        bound = 1.0 / math.sqrt(d_in)
        w = jax.random.uniform(kw, (d_in, d_out), jnp.float32, -bound, bound)
        b = jax.random.uniform(kb, (d_out,), jnp.float32, -bound, bound)
        gamma = 1.0 + 0.1 * jax.random.normal(kg, (d_out,), jnp.float32)
        beta = 0.1 * jax.random.normal(kbt, (d_out,), jnp.float32)
        return w, b, gamma, beta

    cases = [
        # (batch, dim_in, dim_out, tile_n, tile_k)
        (32, 256, 256, 128, 128),   # aligned; exercises the (N parallel, K reduce) grid
        (5, 20, 12, None, None),    # unaligned; exercises padding + masked batch stats
    ]

    for i, (batch, d_in, d_out, tn, tk) in enumerate(cases):
        key, kx, kt, kp = jax.random.split(key, 4)
        x = jax.random.normal(kx, (batch, d_in), jnp.float32)
        t = jax.random.normal(kt, (batch,), jnp.float32)  # ignored by the module
        w, b, gamma, beta = make_params(kp, d_in, d_out)

        out = ignore_linear(t, x, w, b, gamma, beta, tile_n=tn, tile_k=tk)
        out = jax.block_until_ready(out)

        expect = ignore_linear_ref(t, x, w, b, gamma, beta)
        assert out.shape == (batch, d_out), out.shape
        assert jnp.allclose(out, expect, atol=1e-3, rtol=1e-3), f"case {i}: mismatch vs reference"

    print("KERNEL_OK")
</pallas_src>

<mosaic_0001>
module attributes {stable_mosaic.version = 11 : i64} {
  func.func @_ignore_linear_kernel(%arg0: i32, %arg1: i32, %arg2: memref<32x128xf32, #tpu.memory_space<vmem>>, %arg3: memref<128x128xf32, #tpu.memory_space<vmem>>, %arg4: memref<1x128xf32, #tpu.memory_space<vmem>>, %arg5: memref<1x128xf32, #tpu.memory_space<vmem>>, %arg6: memref<1x128xf32, #tpu.memory_space<vmem>>, %arg7: memref<32x128xf32, #tpu.memory_space<vmem>>, %arg8: memref<32x128xf32, #tpu.memory_space<vmem>>) attributes {dimension_semantics = [#tpu.dimension_semantics<parallel>, #tpu.dimension_semantics<arbitrary>], iteration_bounds = array<i64: 2, 2>, scalar_prefetch = 0 : i64, scratch_operands = 1 : i64, tpu.core_type = #tpu.core_type<tc>, window_params = [{transform_indices = @transform_0, window_bounds = array<i64: 32, 128>}, {transform_indices = @transform_1, window_bounds = array<i64: 128, 128>}, {transform_indices = @transform_2, window_bounds = array<i64: 1, 128>}, {transform_indices = @transform_3, window_bounds = array<i64: 1, 128>}, {transform_indices = @transform_4, window_bounds = array<i64: 1, 128>}, {transform_indices = @transform_5, window_bounds = array<i64: 32, 128>}]} {
    %c0_i32 = arith.constant 0 : i32
    %0 = arith.cmpi eq, %arg1, %c0_i32 : i32
    %1 = arith.extui %0 : i1 to i32
    %c0_i32_0 = arith.constant 0 : i32
    %2 = arith.cmpi ne, %1, %c0_i32_0 : i32
    scf.if %2 {
      %c0_9 = arith.constant 0 : index
      %c0_10 = arith.constant 0 : index
      %12 = vector.load %arg4[%c0_9, %c0_10] : memref<1x128xf32, #tpu.memory_space<vmem>>, vector<1x128xf32>
      %13 = vector.shape_cast %12 : vector<1x128xf32> to vector<1x128xf32>
      %14 = vector.broadcast %13 : vector<1x128xf32> to vector<32x128xf32>
      %c0_11 = arith.constant 0 : index
      %c0_12 = arith.constant 0 : index
      %15 = vector.load %arg8[%c0_11, %c0_12] : memref<32x128xf32, #tpu.memory_space<vmem>>, vector<32x128xf32>
      tpu.vector_store %arg8[%c0_11, %c0_12], %14 {strides = array<i32>} : memref<32x128xf32, #tpu.memory_space<vmem>>, vector<32x128xf32>,
    } else {
    }
    %c0 = arith.constant 0 : index
    %c0_1 = arith.constant 0 : index
    %3 = vector.load %arg8[%c0, %c0_1] : memref<32x128xf32, #tpu.memory_space<vmem>>, vector<32x128xf32>
    %c0_2 = arith.constant 0 : index
    %c0_3 = arith.constant 0 : index
    %4 = vector.load %arg2[%c0_2, %c0_3] : memref<32x128xf32, #tpu.memory_space<vmem>>, vector<32x128xf32>
    %c0_4 = arith.constant 0 : index
    %c0_5 = arith.constant 0 : index
    %5 = vector.load %arg3[%c0_4, %c0_5] : memref<128x128xf32, #tpu.memory_space<vmem>>, vector<128x128xf32>
    %cst = arith.constant dense<0.000000e+00> : vector<32x128xf32>
    %6 = tpu.matmul %4, %5, %cst {dimension_numbers = #tpu.dot_dimension_numbers<[1], [0], [0], [1], [0, 0, 1, 1], [], []>} : vector<32x128xf32>, vector<128x128xf32>, vector<32x128xf32> -> vector<32x128xf32>
    %7 = arith.addf %3, %6 : vector<32x128xf32>
    %c0_6 = arith.constant 0 : index
    %c0_7 = arith.constant 0 : index
    %8 = vector.load %arg8[%c0_6, %c0_7] : memref<32x128xf32, #tpu.memory_space<vmem>>, vector<32x128xf32>
    tpu.vector_store %arg8[%c0_6, %c0_7], %7 {strides = array<i32>} : memref<32x128xf32, #tpu.memory_space<vmem>>, vector<32x128xf32>,
    %c1_i32 = arith.constant 1 : i32
    %9 = arith.cmpi eq, %arg1, %c1_i32 : i32
    %10 = arith.extui %9 : i1 to i32
    %c0_i32_8 = arith.constant 0 : i32
    %11 = arith.cmpi ne, %10, %c0_i32_8 : i32
    scf.if %11 {
      %c0_9 = arith.constant 0 : index
      %c0_10 = arith.constant 0 : index
      %12 = vector.load %arg8[%c0_9, %c0_10] : memref<32x128xf32, #tpu.memory_space<vmem>>, vector<32x128xf32>
      %cst_11 = arith.constant dense<0.000000e+00> : vector<128xf32>
      %13 = vector.multi_reduction <add>, %12, %cst_11 [0] : vector<32x128xf32> to vector<128xf32>
      %14 = vector.shape_cast %13 : vector<128xf32> to vector<1x128xf32>
      %cst_12 = arith.constant 3.200000e+01 : f32
      %15 = vector.broadcast %cst_12 : f32 to vector<1x128xf32>
      %16 = arith.divf %14, %15 : vector<1x128xf32>
      %17 = vector.broadcast %16 : vector<1x128xf32> to vector<32x128xf32>
      %18 = arith.subf %12, %17 : vector<32x128xf32>
      %19 = arith.mulf %18, %18 : vector<32x128xf32>
      %cst_13 = arith.constant dense<0.000000e+00> : vector<128xf32>
      %20 = vector.multi_reduction <add>, %19, %cst_13 [0] : vector<32x128xf32> to vector<128xf32>
      %21 = vector.shape_cast %20 : vector<128xf32> to vector<1x128xf32>
      %cst_14 = arith.constant 3.200000e+01 : f32
      %22 = vector.broadcast %cst_14 : f32 to vector<1x128xf32>
      %23 = arith.divf %21, %22 : vector<1x128xf32>
      %cst_15 = arith.constant 9.99999974E-6 : f32
      %24 = vector.broadcast %cst_15 : f32 to vector<1x128xf32>
      %25 = arith.addf %23, %24 : vector<1x128xf32>
      %26 = math.rsqrt %25 : vector<1x128xf32>
      %27 = vector.broadcast %26 : vector<1x128xf32> to vector<32x128xf32>
      %28 = arith.mulf %18, %27 : vector<32x128xf32>
      %c0_16 = arith.constant 0 : index
      %c0_17 = arith.constant 0 : index
      %29 = vector.load %arg5[%c0_16, %c0_17] : memref<1x128xf32, #tpu.memory_space<vmem>>, vector<1x128xf32>
      %30 = vector.broadcast %29 : vector<1x128xf32> to vector<32x128xf32>
      %31 = arith.mulf %28, %30 : vector<32x128xf32>
      %c0_18 = arith.constant 0 : index
      %c0_19 = arith.constant 0 : index
      %32 = vector.load %arg6[%c0_18, %c0_19] : memref<1x128xf32, #tpu.memory_space<vmem>>, vector<1x128xf32>
      %33 = vector.broadcast %32 : vector<1x128xf32> to vector<32x128xf32>
      %34 = arith.addf %31, %33 : vector<32x128xf32>
      %c0_20 = arith.constant 0 : index
      %c0_21 = arith.constant 0 : index
      %35 = vector.load %arg7[%c0_20, %c0_21] : memref<32x128xf32, #tpu.memory_space<vmem>>, vector<32x128xf32>
      tpu.vector_store %arg7[%c0_20, %c0_21], %34 {strides = array<i32>} : memref<32x128xf32, #tpu.memory_space<vmem>>, vector<32x128xf32>,
    } else {
    }
    return
  }
  func.func @transform_0(%arg0: i32, %arg1: i32) -> (i32, i32) {
    %c0_i32 = arith.constant 0 : i32
    %c0_i32_0 = arith.constant 0 : i32
    return %c0_i32, %arg1 : i32, i32
  }
  func.func @transform_1(%arg0: i32, %arg1: i32) -> (i32, i32) {
    %c0_i32 = arith.constant 0 : i32
    return %arg1, %arg0 : i32, i32
  }
  func.func @transform_2(%arg0: i32, %arg1: i32) -> (i32, i32) {
    %c0_i32 = arith.constant 0 : i32
    %c0_i32_0 = arith.constant 0 : i32
    return %c0_i32, %arg0 : i32, i32
  }
  func.func @transform_3(%arg0: i32, %arg1: i32) -> (i32, i32) {
    %c0_i32 = arith.constant 0 : i32
    %c0_i32_0 = arith.constant 0 : i32
    return %c0_i32, %arg0 : i32, i32
  }
  func.func @transform_4(%arg0: i32, %arg1: i32) -> (i32, i32) {
    %c0_i32 = arith.constant 0 : i32
    %c0_i32_0 = arith.constant 0 : i32
    return %c0_i32, %arg0 : i32, i32
  }
  func.func @transform_5(%arg0: i32, %arg1: i32) -> (i32, i32) {
    %c0_i32 = arith.constant 0 : i32
    %c0_i32_0 = arith.constant 0 : i32
    return %c0_i32, %arg0 : i32, i32
  }
}

</mosaic_0001>

<llo_original>
// kernel: tpu_custom_call.1
$region0: #{tpu_custom_call.1}
  #allocation0 [shape = 'u32[]', space=smem, size = 0x4, offset = 0x4, fixed_abs, tag = 'smem constant byte address 0x4 - core index']
  #allocation1 [shape = 'u32[144,128]{1,0:T(1,128)}', space=vmem, size = 0x12000, scoped, tag = 'internal scratch']
  #allocation2 [shape = 'f32[32,128]{1,0:T(8,128)}', space=vmem, size = 0x4000, scoped, tag = 'scratch operand']
  %s0 = inlined_call_operand.hbm [shape: f32[32,256], index: 0, kind: input, shape index: {}]
  %s1 = inlined_call_operand.hbm [shape: f32[256,256], index: 1, kind: input, shape index: {}]
  %s2 = inlined_call_operand.vmem [shape: f32[1,256], index: 2, kind: input, shape index: {}]
  %s3 = inlined_call_operand.vmem [shape: f32[1,256], index: 3, kind: input, shape index: {}]
  %s4 = inlined_call_operand.vmem [shape: f32[1,256], index: 4, kind: input, shape index: {}]
  %s5 = inlined_call_operand.hbm [shape: f32[32,256], index: 5, kind: output, shape index: {}]
  %s6 = sld [smem:[#allocation0]]
  $region69: #{tpu_custom_call.1} parent=0
    _
  %s8 = ssub.s32 1, %s6
  %s9 = scalar_select 0, %s8, %s6
  $region1: #{tpu_custom_call.1} parent=0
    #allocation3 [shape = 'u8[32768]{0}', space=vmem, size = 0x8000, scoped, tag = 'input window, operand 0']
    #allocation4 [shape = 's32[2]{0}', space=sflag, size = 0x8, scoped, tag = 'scoped memory for tpu_custom_call.1']
    #allocation5 [shape = 's32[2]{0}', space=sflag, size = 0x8, scoped, tag = 'scoped memory for tpu_custom_call.1']
    #allocation6 [shape = 'u8[131072]{0}', space=vmem, size = 0x20000, scoped, tag = 'input window, operand 1']
    #allocation7 [shape = 's32[2]{0}', space=sflag, size = 0x8, scoped, tag = 'scoped memory for tpu_custom_call.1']
    #allocation8 [shape = 'u8[32768]{0}', space=vmem, size = 0x8000, scoped, tag = 'output window, operand 0']
    %10 = vsyncpa [#allocation4], 0
    %s11 = scalar_lea.sflag [#allocation4], 1
    %12 = vsyncpa %s11, 0
    %13 = vsyncpa [#allocation7], 0
    %s14 = scalar_lea.sflag [#allocation7], 1
    %15 = vsyncpa %s14, 0
    %16 = vsyncpa [#allocation5], 0
    %s17 = scalar_lea.sflag [#allocation5], 1
    %18 = vsyncpa %s17, 0
    loop: start=0, step=1, limit=6
    $region2: #{tpu_custom_call.1} parent=1 // loop_pre_header
      _
    $region3: #{tpu_custom_call.1} parent=1 // loop_header
      %s20 = sphi 0, %s24
      %p21 = scmp.ge.s32.totalorder %s20, 6
      %s27 = sphi 0, %s39
      %s28 = sphi 0, %s35
      %s29 = sphi 0, %s27
      %s30 = sphi 0, %s28
      %s31 = sphi 0, %s29
      %s32 = sphi 0, %s30
      %s42 = sphi 0, %s44
      %s45 = sphi 0, %s42
      %s46 = sphi 0, %s45
      %s62 = sphi 0, %s46
      %s70 = sphi 0, %s72
      %s73 = sphi 0, %s70
      %s74 = sphi 0, %s73
      %s90 = sphi 0, %s74
      %s96 = sphi 0, %s98
      %s99 = sphi 0, %s96
      %s100 = sphi 0, %s99
      %s116 = sphi 0, %s100
      %s122 = sphi 0, %s124
      %s125 = sphi 0, %s122
      %s126 = sphi 0, %s125
      %s142 = sphi 0, %s126
      %s148 = sphi 0, %s150
      %s151 = sphi 0, %s148
      %s152 = sphi 0, %s151
      %s168 = sphi 0, %s152
      %s174 = sphi 0, %s176
      %s177 = sphi 0, %s174
      %s178 = sphi 0, %s177
      %s194 = sphi 0, %s178
    $region4: #{tpu_custom_call.1} parent=1 // loop_header_branch
      %23 = sbr.rel (%p21) target = $region8
    $region5: #{tpu_custom_call.1} parent=1 // loop_body
      %s25 = ssub.s32 %s20, 1
      %s26 = ssub.s32 %s20, 2
      %s33 = sadd.s32 1, %s28
      %p34 = scmp.ge.s32.totalorder %s33, 2
      %s35 = scalar_select %p34, 0, %s33
      %s36 = sadd.s32 1, %s27
      %s37 = scalar_select %p34, %s36, %s27
      %p38 = scmp.ge.s32.totalorder %s37, 2
      %s39 = scalar_select %p38, 0, %s37
      %s40 = ssub.s32 %s28, %s35
      %p41 = scmp.eq.s32.totalorder %s40, 0
      %s43 = sadd.s32 %s42, 1
      %s44 = scalar_select %p41, %s42, %s43
      %p47 = pneg %p41
      %p48 = scmp.eq.s32.totalorder %s20, 3
      %p49 = por %p47, %p48
      %p50 = scmp.ne.s32.totalorder %s42, %s45
      %p51 = scmp.eq.s32.totalorder %s20, 0
      %p52 = por %p50, %p51
      %p53 = scmp.ne.s32.totalorder %s42, %s45
      %p54 = scmp.eq.s32.totalorder %s25, 3
      %p55 = por %p53, %p54
      %p56 = scmp.ne.s32.totalorder %s45, %s46
      %p57 = scmp.eq.s32.totalorder %s25, 0
      %p58 = por %p56, %p57
      %p59 = scmp.ne.s32.totalorder %s45, %s46
      %p60 = scmp.eq.s32.totalorder %s26, 3
      %p61 = por %p59, %p60
      %p63 = scmp.ne.s32.totalorder %s46, %s62
      %p64 = scmp.eq.s32.totalorder %s26, 0
      %p65 = por %p63, %p64
      %s66 = ssub.s32 %s28, %s35
      %s67 = ssub.s32 %s27, %s39
      %s68 = sor.u32 %s66, %s67
      %p69 = scmp.eq.s32.totalorder %s68, 0
      %s71 = sadd.s32 %s70, 1
      %s72 = scalar_select %p69, %s70, %s71
      %p75 = pneg %p69
      %p76 = scmp.eq.s32.totalorder %s20, 3
      %p77 = por %p75, %p76
      %p78 = scmp.ne.s32.totalorder %s70, %s73
      %p79 = scmp.eq.s32.totalorder %s20, 0
      %p80 = por %p78, %p79
      %p81 = scmp.ne.s32.totalorder %s70, %s73
      %p82 = scmp.eq.s32.totalorder %s25, 3
      %p83 = por %p81, %p82
      %p84 = scmp.ne.s32.totalorder %s73, %s74
      %p85 = scmp.eq.s32.totalorder %s25, 0
      %p86 = por %p84, %p85
      %p87 = scmp.ne.s32.totalorder %s73, %s74
      %p88 = scmp.eq.s32.totalorder %s26, 3
      %p89 = por %p87, %p88
      %p91 = scmp.ne.s32.totalorder %s74, %s90
      %p92 = scmp.eq.s32.totalorder %s26, 0
      %p93 = por %p91, %p92
      %s94 = ssub.s32 %s27, %s39
      %p95 = scmp.eq.s32.totalorder %s94, 0
      %s97 = sadd.s32 %s96, 1
      %s98 = scalar_select %p95, %s96, %s97
      %p101 = pneg %p95
      %p102 = scmp.eq.s32.totalorder %s20, 3
      %p103 = por %p101, %p102
      %p104 = scmp.ne.s32.totalorder %s96, %s99
      %p105 = scmp.eq.s32.totalorder %s20, 0
      %p106 = por %p104, %p105
      %p107 = scmp.ne.s32.totalorder %s96, %s99
      %p108 = scmp.eq.s32.totalorder %s25, 3
      %p109 = por %p107, %p108
      %p110 = scmp.ne.s32.totalorder %s99, %s100
      %p111 = scmp.eq.s32.totalorder %s25, 0
      %p112 = por %p110, %p111
      %p113 = scmp.ne.s32.totalorder %s99, %s100
      %p114 = scmp.eq.s32.totalorder %s26, 3
      %p115 = por %p113, %p114
      %p117 = scmp.ne.s32.totalorder %s100, %s116
      %p118 = scmp.eq.s32.totalorder %s26, 0
      %p119 = por %p117, %p118
      %s120 = ssub.s32 %s27, %s39
      %p121 = scmp.eq.s32.totalorder %s120, 0
      %s123 = sadd.s32 %s122, 1
      %s124 = scalar_select %p121, %s122, %s123
      %p127 = pneg %p121
      %p128 = scmp.eq.s32.totalorder %s20, 3
      %p129 = por %p127, %p128
      %p130 = scmp.ne.s32.totalorder %s122, %s125
      %p131 = scmp.eq.s32.totalorder %s20, 0
      %p132 = por %p130, %p131
      %p133 = scmp.ne.s32.totalorder %s122, %s125
      %p134 = scmp.eq.s32.totalorder %s25, 3
      %p135 = por %p133, %p134
      %p136 = scmp.ne.s32.totalorder %s125, %s126
      %p137 = scmp.eq.s32.totalorder %s25, 0
      %p138 = por %p136, %p137
      %p139 = scmp.ne.s32.totalorder %s125, %s126
      %p140 = scmp.eq.s32.totalorder %s26, 3
      %p141 = por %p139, %p140
      %p143 = scmp.ne.s32.totalorder %s126, %s142
      %p144 = scmp.eq.s32.totalorder %s26, 0
      %p145 = por %p143, %p144
      %s146 = ssub.s32 %s27, %s39
      %p147 = scmp.eq.s32.totalorder %s146, 0
      %s149 = sadd.s32 %s148, 1
      %s150 = scalar_select %p147, %s148, %s149
      %p153 = pneg %p147
      %p154 = scmp.eq.s32.totalorder %s20, 3
      %p155 = por %p153, %p154
      %p156 = scmp.ne.s32.totalorder %s148, %s151
      %p157 = scmp.eq.s32.totalorder %s20, 0
      %p158 = por %p156, %p157
      %p159 = scmp.ne.s32.totalorder %s148, %s151
      %p160 = scmp.eq.s32.totalorder %s25, 3
      %p161 = por %p159, %p160
      %p162 = scmp.ne.s32.totalorder %s151, %s152
      %p163 = scmp.eq.s32.totalorder %s25, 0
      %p164 = por %p162, %p163
      %p165 = scmp.ne.s32.totalorder %s151, %s152
      %p166 = scmp.eq.s32.totalorder %s26, 3
      %p167 = por %p165, %p166
      %p169 = scmp.ne.s32.totalorder %s152, %s168
      %p170 = scmp.eq.s32.totalorder %s26, 0
      %p171 = por %p169, %p170
      %s172 = ssub.s32 %s27, %s39
      %p173 = scmp.eq.s32.totalorder %s172, 0
      %s175 = sadd.s32 %s174, 1
      %s176 = scalar_select %p173, %s174, %s175
      %p179 = pneg %p173
      %p180 = scmp.eq.s32.totalorder %s20, 3
      %p181 = por %p179, %p180
      %p182 = scmp.ne.s32.totalorder %s174, %s177
      %p183 = scmp.eq.s32.totalorder %s20, 0
      %p184 = por %p182, %p183
      %p185 = scmp.ne.s32.totalorder %s174, %s177
      %p186 = scmp.eq.s32.totalorder %s25, 3
      %p187 = por %p185, %p186
      %p188 = scmp.ne.s32.totalorder %s177, %s178
      %p189 = scmp.eq.s32.totalorder %s25, 0
      %p190 = por %p188, %p189
      %p191 = scmp.ne.s32.totalorder %s177, %s178
      %p192 = scmp.eq.s32.totalorder %s26, 3
      %p193 = por %p191, %p192
      %p195 = scmp.ne.s32.totalorder %s178, %s194
      %p196 = scmp.eq.s32.totalorder %s26, 0
      %p197 = por %p195, %p196
      %p198 = scmp.le.s32.totalorder 1, %s20
      %p199 = scmp.lt.s32.totalorder %s20, 5
      %p200 = pnand %p198, %p199
      %p201 = pneg %p200
      // Predicated region
      $region9: #{tpu_custom_call.1} parent=5 // pred_check
        _
      $region10: #{tpu_custom_call.1} parent=5 // pred_check_branch
        %203 = sbr.rel (%p200) target = $region12
      $region11: #{tpu_custom_call.1} parent=5 // pred_region
        %s204 = ssub.s32 %s20, 1
      $region12: #{tpu_custom_call.1} parent=5 // pred_fallthru
        _
      %p205 = scmp.lt.s32.totalorder %s20, 4
      // Predicated region
      $region13: #{tpu_custom_call.1} parent=5 // pred_check
        %p206 = pneg %p205
      $region14: #{tpu_custom_call.1} parent=5 // pred_check_branch
        %208 = sbr.rel (%p206) target = $region16
      $region15: #{tpu_custom_call.1} parent=5 // pred_region
        // Predicated region
        $region17: #{tpu_custom_call.1} parent=15 // pred_check
          %p209 = pneg %p52
        $region18: #{tpu_custom_call.1} parent=15 // pred_check_branch
          %211 = sbr.rel (%p209) target = $region20
        $region19: #{tpu_custom_call.1} parent=15 // pred_region
          %s212 = sand.u32 %s42, 1
          %s213 = scalar_lea.sflag [#allocation4], %s212
          %s214 = sand.u32 %s42, 1
          %s215 = smul.addr %s214, 32
          %s216 = scalar_lea.vmem [#allocation3], %s215
          %s218 = ssub.s32 512, 512
          %219 = vsyncadd %s213, %s218
          %s220 = smul.addr %s28, 128
          %s221 = scalar_lea.hbm %s0, %s220
          %s222 = sshll.u32 %s216, 4
          %s223 = int_to_ptr.vmem [resolvable:$true] %s222
          %228 = dma.hbm_to_vmem [thread:$0]  %s221, 512, %s223, %s213, 256, 128, 8
        $region20: #{tpu_custom_call.1} parent=15 // pred_fallthru
          _
        // Predicated region
        $region21: #{tpu_custom_call.1} parent=15 // pred_check
          %p229 = pneg %p80
        $region22: #{tpu_custom_call.1} parent=15 // pred_check_branch
          %231 = sbr.rel (%p229) target = $region24
        $region23: #{tpu_custom_call.1} parent=15 // pred_region
          %s232 = sand.u32 %s70, 1
          %s233 = scalar_lea.sflag [#allocation7], %s232
          %s234 = sand.u32 %s70, 1
          %s235 = smul.addr %s234, 128
          %s236 = scalar_lea.vmem [#allocation6], %s235
          %s237 = smul.u32 16, %s28
          %s239 = ssub.s32 2048, 2048
          %240 = vsyncadd %s233, %s239
          %s241 = smul.addr %s237, 2
          %s242 = sadd.s32 %s27, %s241
          %s243 = smul.addr %s242, 128
          %s244 = scalar_lea.hbm %s1, %s243
          %s245 = sshll.u32 %s236, 4
          %s246 = int_to_ptr.vmem [resolvable:$true] %s245
          %251 = dma.hbm_to_vmem [thread:$0]  %s244, 2048, %s246, %s233, 256, 128, 8
        $region24: #{tpu_custom_call.1} parent=15 // pred_fallthru
          _
        // Predicated region
        $region25: #{tpu_custom_call.1} parent=15 // pred_check
          %p252 = pneg %p106
        $region26: #{tpu_custom_call.1} parent=15 // pred_check_branch
          %254 = sbr.rel (%p252) target = $region28
        $region27: #{tpu_custom_call.1} parent=15 // pred_region
          %p255 = scmp.lt.s32.totalorder %s27, 1
          %s256 = scalar_select %p255, %s27, 1
          %s257 = scalar_lea.vmem %s2, %s256
        $region28: #{tpu_custom_call.1} parent=15 // pred_fallthru
          _
        // Predicated region
        $region29: #{tpu_custom_call.1} parent=15 // pred_check
          %p258 = pneg %p132
        $region30: #{tpu_custom_call.1} parent=15 // pred_check_branch
          %260 = sbr.rel (%p258) target = $region32
        $region31: #{tpu_custom_call.1} parent=15 // pred_region
          %p261 = scmp.lt.s32.totalorder %s27, 1
          %s262 = scalar_select %p261, %s27, 1
          %s263 = scalar_lea.vmem %s3, %s262
        $region32: #{tpu_custom_call.1} parent=15 // pred_fallthru
          _
        // Predicated region
        $region33: #{tpu_custom_call.1} parent=15 // pred_check
          %p264 = pneg %p158
        $region34: #{tpu_custom_call.1} parent=15 // pred_check_branch
          %266 = sbr.rel (%p264) target = $region36
        $region35: #{tpu_custom_call.1} parent=15 // pred_region
          %p267 = scmp.lt.s32.totalorder %s27, 1
          %s268 = scalar_select %p267, %s27, 1
          %s269 = scalar_lea.vmem %s4, %s268
        $region36: #{tpu_custom_call.1} parent=15 // pred_fallthru
          _
      $region16: #{tpu_custom_call.1} parent=5 // pred_fallthru
        _
      %p270 = scmp.le.s32.totalorder 1, %s20
      %p271 = scmp.lt.s32.totalorder %s20, 5
      %p272 = pnand %p270, %p271
      %p273 = pneg %p272
      // Predicated region
      $region37: #{tpu_custom_call.1} parent=5 // pred_check
        _
      $region38: #{tpu_custom_call.1} parent=5 // pred_check_branch
        %275 = sbr.rel (%p272) target = $region40
      $region39: #{tpu_custom_call.1} parent=5 // pred_region
        %s276 = ssub.s32 %s20, 1
        %s277 = sand.u32 %s45, 1
        %s278 = scalar_lea.sflag [#allocation4], %s277
        %s279 = sand.u32 %s45, 1
        %s280 = smul.addr %s279, 32
        %s281 = scalar_lea.vmem [#allocation3], %s280
        // Predicated region
        $region41: #{tpu_custom_call.1} parent=39 // pred_check
          %p282 = pneg %p58
        $region42: #{tpu_custom_call.1} parent=39 // pred_check_branch
          %284 = sbr.rel (%p282) target = $region44
        $region43: #{tpu_custom_call.1} parent=39 // pred_region
          %285 = dma.done %s278, 512
        $region44: #{tpu_custom_call.1} parent=39 // pred_fallthru
          _
        %s286 = sand.u32 %s73, 1
        %s287 = scalar_lea.sflag [#allocation7], %s286
        %s288 = sand.u32 %s73, 1
        %s289 = smul.addr %s288, 128
        %s290 = scalar_lea.vmem [#allocation6], %s289
        // Predicated region
        $region45: #{tpu_custom_call.1} parent=39 // pred_check
          %p291 = pneg %p86
        $region46: #{tpu_custom_call.1} parent=39 // pred_check_branch
          %293 = sbr.rel (%p291) target = $region48
        $region47: #{tpu_custom_call.1} parent=39 // pred_region
          %294 = dma.done %s287, 2048
        $region48: #{tpu_custom_call.1} parent=39 // pred_fallthru
          _
        %s295 = sand.u32 %s45, 1
        %s296 = scalar_lea.sflag [#allocation4], %s295
        %s297 = sand.u32 %s45, 1
        %s298 = smul.addr %s297, 32
        %s299 = scalar_lea.vmem [#allocation3], %s298
        %p300 = pneg %p58
        %p301 = pneg %p55
        %s302 = sand.u32 %s73, 1
        %s303 = scalar_lea.sflag [#allocation7], %s302
        %s304 = sand.u32 %s73, 1
        %s305 = smul.addr %s304, 128
        %s306 = scalar_lea.vmem [#allocation6], %s305
        %p307 = pneg %p86
        %p308 = pneg %p83
        %p309 = scmp.lt.s32.totalorder %s29, 1
        %s310 = scalar_select %p309, %s29, 1
        %s311 = scalar_lea.vmem %s2, %s310
        %p312 = pneg %p112
        %p313 = pneg %p109
        %p314 = scmp.lt.s32.totalorder %s29, 1
        %s315 = scalar_select %p314, %s29, 1
        %s316 = scalar_lea.vmem %s3, %s315
        %p317 = pneg %p138
        %p318 = pneg %p135
        %p319 = scmp.lt.s32.totalorder %s29, 1
        %s320 = scalar_select %p319, %s29, 1
        %s321 = scalar_lea.vmem %s4, %s320
        %p322 = pneg %p164
        %p323 = pneg %p161
        %p324 = pneg %p190
        %p325 = pneg %p187
        %s326 = sand.u32 %s177, 1
        %s327 = scalar_lea.sflag [#allocation5], %s326
        %s328 = sand.u32 %s177, 1
        %s329 = smul.addr %s328, 32
        %s330 = scalar_lea.vmem [#allocation8], %s329
        %s331 = smul.u32 16, %s30
        %p332 = scmp.lt.s32.totalorder %s29, 1
        %s333 = scalar_select %p332, %s29, 1
        %s334 = scalar_lea.vmem %s2, %s333
        %p335 = scmp.lt.s32.totalorder %s29, 1
        %s336 = scalar_select %p335, %s29, 1
        %s337 = scalar_lea.vmem %s3, %s336
        %p338 = scmp.lt.s32.totalorder %s29, 1
        %s339 = scalar_select %p338, %s29, 1
        %s340 = scalar_lea.vmem %s4, %s339
        %p341 = scmp.eq.s32.totalorder %s30, 0
        // Predicated region
        $region49: #{tpu_custom_call.1} parent=39 // pred_check
          %p342 = pneg %p341
        $region50: #{tpu_custom_call.1} parent=39 // pred_check_branch
          %344 = sbr.rel (%p342) target = $region52
        $region51: #{tpu_custom_call.1} parent=39 // pred_region
          %v345 = vld [vmem:[%s334] sm:$0x1]
          %v347 = vlaneseq
          %v348 = vshrl.u32 %v347, 7
          %v349 = vsub.s32 0, %v348
          %v350 = vrot.slane %v345, %v349
          %352 = vst [vmem:[#allocation2] sm:$0xff] %v350
          %353 = vst [vmem:[#allocation2 + $0x8] sm:$0xff] %v350
          %354 = vst [vmem:[#allocation2 + $0x10] sm:$0xff] %v350
          %355 = vst [vmem:[#allocation2 + $0x18] sm:$0xff] %v350
        $region52: #{tpu_custom_call.1} parent=39 // pred_fallthru
          _
        %v356 = vld [vmem:[#allocation2] sm:$0xff]
        %v357 = vld [vmem:[#allocation2 + $0x8] sm:$0xff]
        %v358 = vld [vmem:[#allocation2 + $0x10] sm:$0xff]
        %v359 = vld [vmem:[#allocation2 + $0x18] sm:$0xff]
        %v360 = vld [vmem:[%s281] sm:$0xff]
        %v361 = vld [vmem:[%s281 + $0x8] sm:$0xff]
        %v362 = vld [vmem:[%s281 + $0x10] sm:$0xff]
        %v363 = vld [vmem:[%s281 + $0x18] sm:$0xff]
        %v364 = vld [vmem:[%s290] sm:$0xff]
        %v365 = vld [vmem:[%s290 + $0x8] sm:$0xff]
        %v366 = vld [vmem:[%s290 + $0x10] sm:$0xff]
        %v367 = vld [vmem:[%s290 + $0x18] sm:$0xff]
        %v368 = vld [vmem:[%s290 + $0x20] sm:$0xff]
        %v369 = vld [vmem:[%s290 + $0x28] sm:$0xff]
        %v370 = vld [vmem:[%s290 + $0x30] sm:$0xff]
        %v371 = vld [vmem:[%s290 + $0x38] sm:$0xff]
        %v372 = vld [vmem:[%s290 + $0x40] sm:$0xff]
        %v373 = vld [vmem:[%s290 + $0x48] sm:$0xff]
        %v374 = vld [vmem:[%s290 + $0x50] sm:$0xff]
        %v375 = vld [vmem:[%s290 + $0x58] sm:$0xff]
        %v376 = vld [vmem:[%s290 + $0x60] sm:$0xff]
        %v377 = vld [vmem:[%s290 + $0x68] sm:$0xff]
        %v378 = vld [vmem:[%s290 + $0x70] sm:$0xff]
        %v379 = vld [vmem:[%s290 + $0x78] sm:$0xff]
        %380 = vmatprep.subr.mxu0 0.0
        %381 = vmatpush1.msra.mxu0 %v379
        %382 = vmatprep.subr.mxu0 0.0
        %383 = vmatpush1.msra.mxu0 %v378
        %384 = vmatprep.subr.mxu0 0.0
        %385 = vmatpush1.msra.mxu0 %v377
        %386 = vmatprep.subr.mxu0 0.0
        %387 = vmatpush1.msra.mxu0 %v376
        %388 = vmatprep.subr.mxu0 0.0
        %389 = vmatpush1.msra.mxu0 %v375
        %390 = vmatprep.subr.mxu0 0.0
        %391 = vmatpush1.msra.mxu0 %v374
        %392 = vmatprep.subr.mxu0 0.0
        %393 = vmatpush1.msra.mxu0 %v373
        %394 = vmatprep.subr.mxu0 0.0
        %395 = vmatpush1.msra.mxu0 %v372
        %396 = vmatprep.subr.mxu0 0.0
        %397 = vmatpush1.msra.mxu0 %v371
        %398 = vmatprep.subr.mxu0 0.0
        %399 = vmatpush1.msra.mxu0 %v370
        %400 = vmatprep.subr.mxu0 0.0
        %401 = vmatpush1.msra.mxu0 %v369
        %402 = vmatprep.subr.mxu0 0.0
        %403 = vmatpush1.msra.mxu0 %v368
        %404 = vmatprep.subr.mxu0 0.0
        %405 = vmatpush1.msra.mxu0 %v367
        %406 = vmatprep.subr.mxu0 0.0
        %407 = vmatpush1.msra.mxu0 %v366
        %408 = vmatprep.subr.mxu0 0.0
        %409 = vmatpush1.msra.mxu0 %v365
        %410 = vmatprep.subr.mxu0 0.0
        %411 = vmatpush1.msra.mxu0 %v364
        %412 = vmatprep.subr.mxu0 0.0
        %413 = vmatpush2.msra.mxu0 0.0
        %414 = vmatprep.subr.mxu0 0.0
        %415 = vmatpush2.msra.mxu0 0.0
        %416 = vmatprep.subr.mxu0 0.0
        %417 = vmatpush2.msra.mxu0 0.0
        %418 = vmatprep.subr.mxu0 0.0
        %419 = vmatpush2.msra.mxu0 0.0
        %420 = vmatprep.subr.mxu0 0.0
        %421 = vmatpush2.msra.mxu0 0.0
        %422 = vmatprep.subr.mxu0 0.0
        %423 = vmatpush2.msra.mxu0 0.0
        %424 = vmatprep.subr.mxu0 0.0
        %425 = vmatpush2.msra.mxu0 0.0
        %426 = vmatprep.subr.mxu0 0.0
        %427 = vmatpush2.msra.mxu0 0.0
        %428 = vmatprep.subr.mxu0 0.0
        %429 = vmatpush2.msra.mxu0 0.0
        %430 = vmatprep.subr.mxu0 0.0
        %431 = vmatpush2.msra.mxu0 0.0
        %432 = vmatprep.subr.mxu0 0.0
        %433 = vmatpush2.msra.mxu0 0.0
        %434 = vmatprep.subr.mxu0 0.0
        %435 = vmatpush2.msra.mxu0 0.0
        %436 = vmatprep.subr.mxu0 0.0
        %437 = vmatpush2.msra.mxu0 0.0
        %438 = vmatprep.subr.mxu0 0.0
        %439 = vmatpush2.msra.mxu0 0.0
        %440 = vmatprep.subr.mxu0 0.0
        %441 = vmatpush2.msra.mxu0 0.0
        %442 = vmatprep.subr.mxu0 0.0
        %443 = vmatpush2.msra.mxu0 0.0
        %444 = vmatprep.mubr.f32.mxu0 0.0
        %445 = vmatmul.mubr.f32.gmra.mxu0 %v360
        %v446 = vpop.f32.mrf.mxu0
        %v447 = vadd.f32 0.0, %v446
        %v448 = vpop.f32.mrf.mxu0
        %449 = vmatprep.mubr.f32.mxu0 0.0
        %450 = vmatmul.mubr.f32.gmra.mxu0 %v361
        %v451 = vpop.f32.mrf.mxu0
        %v452 = vadd.f32 0.0, %v451
        %v453 = vpop.f32.mrf.mxu0
        %454 = vmatprep.mubr.f32.mxu0 0.0
        %455 = vmatmul.mubr.f32.gmra.mxu0 %v362
        %v456 = vpop.f32.mrf.mxu0
        %v457 = vadd.f32 0.0, %v456
        %v458 = vpop.f32.mrf.mxu0
        %459 = vmatprep.mubr.f32.mxu0 0.0
        %460 = vmatmul.mubr.f32.gmra.mxu0 %v363
        %v461 = vpop.f32.mrf.mxu0
        %v462 = vadd.f32 0.0, %v461
        %v463 = vpop.f32.mrf.mxu0
        %464 = vdwg.mxu0
        %v465 = vadd.f32 %v356, %v447
        %v466 = vadd.f32 %v357, %v452
        %v467 = vadd.f32 %v358, %v457
        %v468 = vadd.f32 %v359, %v462
        %469 = vst [vmem:[#allocation2] sm:$0xff] %v465
        %470 = vst [vmem:[#allocation2 + $0x8] sm:$0xff] %v466
        %471 = vst [vmem:[#allocation2 + $0x10] sm:$0xff] %v467
        %472 = vst [vmem:[#allocation2 + $0x18] sm:$0xff] %v468
        %p473 = scmp.eq.s32.totalorder %s30, 1
        // Predicated region
        $region53: #{tpu_custom_call.1} parent=39 // pred_check
          %p474 = pneg %p473
        $region54: #{tpu_custom_call.1} parent=39 // pred_check_branch
          %476 = sbr.rel (%p474) target = $region56
        $region55: #{tpu_custom_call.1} parent=39 // pred_region
          %v477 = vld [vmem:[#allocation2] sm:$0xff]
          %v478 = vld [vmem:[#allocation2 + $0x8] sm:$0xff]
          %v479 = vld [vmem:[#allocation2 + $0x10] sm:$0xff]
          %v480 = vld [vmem:[#allocation2 + $0x18] sm:$0xff]
          %v481 = vadd.f32 %v477, %v478
          %v482 = vadd.f32 %v481, %v479
          %v483 = vadd.f32 %v482, %v480
          %v484 = vrot.slane %v483, 4
          %v485 = vadd.f32 %v483, %v484
          %v486 = vrot.slane %v485, 2
          %v487 = vadd.f32 %v485, %v486
          %v488 = vrot.slane %v487, 1
          %v489 = vadd.f32 %v487, %v488
          %v490 = vrcp.pop 32.0
          %v491 = vmul.f32 %v489, %v490
          %v492 = vsub.f32 %v477, %v491
          %v493 = vsub.f32 %v478, %v491
          %v494 = vsub.f32 %v479, %v491
          %v495 = vsub.f32 %v480, %v491
          %v496 = vmul.f32 %v492, %v492
          %v497 = vmul.f32 %v493, %v493
          %v498 = vmul.f32 %v494, %v494
          %v499 = vmul.f32 %v495, %v495
          %v500 = vadd.f32 %v496, %v497
          %v501 = vadd.f32 %v500, %v498
          %v502 = vadd.f32 %v501, %v499
          %v503 = vrot.slane %v502, 4
          %v504 = vadd.f32 %v502, %v503
          %v505 = vrot.slane %v504, 2
          %v506 = vadd.f32 %v504, %v505
          %v507 = vrot.slane %v506, 1
          %v508 = vadd.f32 %v506, %v507
          %v509 = vmul.f32 %v508, %v490
          %v510 = vadd.f32 %v509, 1e-05
          %v511 = vrsqrt.pop %v510
          %v512 = vmul.f32 %v492, %v511
          %v513 = vmul.f32 %v493, %v511
          %v514 = vmul.f32 %v494, %v511
          %v515 = vmul.f32 %v495, %v511
          %v516 = vld [vmem:[%s337] sm:$0x1]
          %v518 = vlaneseq
          %v519 = vshrl.u32 %v518, 7
          %v520 = vsub.s32 0, %v519
          %v521 = vrot.slane %v516, %v520
          %v523 = vmul.f32 %v512, %v521
          %v524 = vmul.f32 %v513, %v521
          %v525 = vmul.f32 %v514, %v521
          %v526 = vmul.f32 %v515, %v521
          %v527 = vld [vmem:[%s340] sm:$0x1]
          %v529 = vlaneseq
          %v530 = vshrl.u32 %v529, 7
          %v531 = vsub.s32 0, %v530
          %v532 = vrot.slane %v527, %v531
          %v534 = vadd.f32 %v523, %v532
          %v535 = vadd.f32 %v524, %v532
          %v536 = vadd.f32 %v525, %v532
          %v537 = vadd.f32 %v526, %v532
          %538 = vst [vmem:[%s330] sm:$0xff] %v534
          %539 = vst [vmem:[%s330 + $0x8] sm:$0xff] %v535
          %540 = vst [vmem:[%s330 + $0x10] sm:$0xff] %v536
          %541 = vst [vmem:[%s330 + $0x18] sm:$0xff] %v537
        $region56: #{tpu_custom_call.1} parent=39 // pred_fallthru
          _
        %s542 = sand.u32 %s177, 1
        %s543 = scalar_lea.sflag [#allocation5], %s542
        %s544 = sand.u32 %s177, 1
        %s545 = smul.addr %s544, 32
        %s546 = scalar_lea.vmem [#allocation8], %s545
        // Predicated region
        $region57: #{tpu_custom_call.1} parent=39 // pred_check
          %p547 = pneg %p187
        $region58: #{tpu_custom_call.1} parent=39 // pred_check_branch
          %549 = sbr.rel (%p547) target = $region60
        $region59: #{tpu_custom_call.1} parent=39 // pred_region
          %s551 = ssub.s32 512, 512
          %552 = vsyncadd %s543, %s551
          %s553 = smul.addr %s29, 128
          %s554 = scalar_lea.hbm %s5, %s553
          %s555 = sshll.u32 %s546, 4
          %s556 = int_to_ptr.vmem [resolvable:$true] %s555
          %561 = dma.vmem_to_hbm [thread:$0]  %s556, 512, %s554, %s543, 128, 256, 8
        $region60: #{tpu_custom_call.1} parent=39 // pred_fallthru
          _
      $region40: #{tpu_custom_call.1} parent=5 // pred_fallthru
        _
      %p562 = scmp.le.s32.totalorder 2, %s20
      // Predicated region
      $region61: #{tpu_custom_call.1} parent=5 // pred_check
        %p563 = pneg %p562
      $region62: #{tpu_custom_call.1} parent=5 // pred_check_branch
        %565 = sbr.rel (%p563) target = $region64
      $region63: #{tpu_custom_call.1} parent=5 // pred_region
        %s566 = ssub.s32 %s20, 2
        // Predicated region
        $region65: #{tpu_custom_call.1} parent=63 // pred_check
          %p567 = pneg %p193
        $region66: #{tpu_custom_call.1} parent=63 // pred_check_branch
          %569 = sbr.rel (%p567) target = $region68
        $region67: #{tpu_custom_call.1} parent=63 // pred_region
          %s570 = sand.u32 %s178, 1
          %s571 = scalar_lea.sflag [#allocation5], %s570
          %s572 = sand.u32 %s178, 1
          %s573 = smul.addr %s572, 32
          %s574 = scalar_lea.vmem [#allocation8], %s573
          %575 = dma.done %s571, 512
        $region68: #{tpu_custom_call.1} parent=63 // pred_fallthru
          _
      $region64: #{tpu_custom_call.1} parent=5 // pred_fallthru
        _
    $region6: #{tpu_custom_call.1} parent=1 // loop_footer
      %s24 = sadd.s32 1, %s20
    $region7: #{tpu_custom_call.1} parent=1 // loop_footer_branch
      %19 = sbr.rel target = $region3
    $region8: #{tpu_custom_call.1} parent=1 // loop_exit
      _
    %576 = vsyncpa [#allocation4], 1
    %s577 = scalar_lea.sflag [#allocation4], 1
    %578 = vsyncpa %s577, 1
    %579 = vsyncpa [#allocation7], 1
    %s580 = scalar_lea.sflag [#allocation7], 1
    %581 = vsyncpa %s580, 1
    %582 = vsyncpa [#allocation5], 1
    %s583 = scalar_lea.sflag [#allocation5], 1
    %584 = vsyncpa %s583, 1

</llo_original>
